<compile_context>
chip_gen: v6e
topology: v6e:2x2x1
jax: 0.10.0
libtpu: 0.0.40
codegen_flags: <defaults>
</compile_context>

<pallas_src>
import functools

import jax
import jax.numpy as jnp
from jax.experimental import pallas as pl
from jax.experimental.pallas import tpu as pltpu


def _round_up(n, m):
    return pl.cdiv(n, m) * m


def _mlp_kernel(x_ref, w1_ref, b1_ref, w2_ref, b2_ref, o_ref):
    # hidden = relu(x @ w1 + b1): MXU matmul with f32 accumulation, f32 epilogue.
    h = jnp.dot(x_ref[...], w1_ref[...], preferred_element_type=jnp.float32)
    h = jnp.maximum(h + b1_ref[...], 0.0)              # (TB, H) + (1, H) broadcast
    # out = hidden @ w2 + b2
    o = jnp.dot(h.astype(w2_ref.dtype), w2_ref[...],
                preferred_element_type=jnp.float32)
    o_ref[...] = (o + b2_ref[...]).astype(o_ref.dtype)


def prepare_params(w1, b1, w2, b2, compute_dtype=jnp.float32):
    """One-time parameter prep, hoisted out of the per-call path.

    Pre-casts the matmul operands (weights) to compute_dtype (use jnp.bfloat16
    on v6e/v7x for MXU peak); biases stay f32 so the bias-add/ReLU epilogue
    runs in f32 on the VPU (right choice on v5e, and accumulation is f32)."""
    return (w1.astype(compute_dtype), b1.astype(jnp.float32),
            w2.astype(compute_dtype), b2.astype(jnp.float32))


def _batch_tiling(B, block_b):
    # Balanced batch tiles (caps padding at <8 rows per tile), and >=2 tiles
    # when B >= 16 so the "parallel" axis can shard across both v7x TensorCores.
    num_tiles = max(pl.cdiv(B, block_b), 2 if B >= 16 else 1)
    tb = _round_up(pl.cdiv(B, num_tiles), 8)
    b_p = num_tiles * tb
    return tb, b_p, num_tiles


@functools.partial(jax.jit, static_argnames=("block_b",))
def line_q_net_forward(x, w1, b1, w2, b2, *, block_b=1024):
    """y = relu(x @ w1 + b1) @ w2 + b2.

    x: (B, IN); w1: (IN, HID); b1: (1, HID); w2: (HID, OUT); b2: (1, OUT).
    Returns (B, OUT) float32."""
    B, IN = x.shape
    HID = w1.shape[1]
    OUT = w2.shape[1]

    tb, b_p, num_tiles = _batch_tiling(B, block_b)

    # Only the batch (sublane) axis is ever padded; feature dims use the
    # full-array-dim BlockSpec rule so no 128-lane padding / slicing passes.
    xp = x.astype(w1.dtype)
    if b_p > B:
        xp = jnp.pad(xp, ((0, b_p - B), (0, 0)))

    out = pl.pallas_call(
        _mlp_kernel,
        out_shape=jax.ShapeDtypeStruct((b_p, OUT), jnp.float32),
        grid=(num_tiles,),
        in_specs=[
            # x tiled over the batch axis; double-buffered by the pipeline.
            pl.BlockSpec((tb, IN), lambda i: (i, 0)),
            # Weights / biases: constant block index -> stay resident in VMEM
            # across all grid steps (no re-DMA).  (pipeline_mode=pl.Buffered(1)
            # would also drop their second buffer; irrelevant at these sizes.)
            pl.BlockSpec((IN, HID), lambda i: (0, 0)),
            pl.BlockSpec((1, HID), lambda i: (0, 0)),
            pl.BlockSpec((HID, OUT), lambda i: (0, 0)),
            pl.BlockSpec((1, OUT), lambda i: (0, 0)),
        ],
        out_specs=pl.BlockSpec((tb, OUT), lambda i: (i, 0)),
        compiler_params=pltpu.CompilerParams(
            # Batch grid axis is independent -> shard across TCs on v7x.
            dimension_semantics=("parallel",)),
    )(xp, w1, b1, w2, b2)

    # Drop batch padding (no-op when b_p == B); fuses into the jit.
    return out[:B]


def init_params(key, in_features, hidden, out_features):
    """Deterministic init mimicking nn.Linear's U(-1/sqrt(fan_in), 1/sqrt(fan_in))."""
    k1, k2, k3, k4 = jax.random.split(key, 4)
    bound1 = 1.0 / jnp.sqrt(in_features)
    bound2 = 1.0 / jnp.sqrt(hidden)
    w1 = jax.random.uniform(k1, (in_features, hidden), jnp.float32,
                            -bound1, bound1)
    b1 = jax.random.uniform(k2, (1, hidden), jnp.float32, -bound1, bound1)
    w2 = jax.random.uniform(k3, (hidden, out_features), jnp.float32,
                            -bound2, bound2)
    b2 = jax.random.uniform(k4, (1, out_features), jnp.float32,
                            -bound2, bound2)
    return w1, b1, w2, b2


if __name__ == "__main__":
    # Small shapes consistent with the module: batch=8, input=16, hidden=32, output=4
    B, IN, HID, OUT = 8, 16, 32, 4
    key = jax.random.PRNGKey(0)
    kx, kp = jax.random.split(key)
    x = jax.random.normal(kx, (B, IN), jnp.float32)
    w1, b1, w2, b2 = init_params(kp, IN, HID, OUT)

    # f32 compute path for the tight correctness check (use jnp.bfloat16 here
    # on v6e/v7x for throughput; loosen tolerances accordingly).
    w1p, b1p, w2p, b2p = prepare_params(w1, b1, w2, b2, jnp.float32)

    y = line_q_net_forward(x, w1p, b1p, w2p, b2p)
    jax.block_until_ready(y)

    # Pure-JAX reference check of the same forward pass.
    ref = jnp.maximum(x @ w1 + b1, 0.0) @ w2 + b2
    assert y.shape == (B, OUT)
    assert jnp.allclose(y, ref, atol=1e-5, rtol=1e-5)

    # TODO(synk): Line_Q_net.save() (torch checkpoint I/O) is host-side and has
    # no Pallas equivalent.

    print("KERNEL_OK")
</pallas_src>

<mosaic_0001>
module attributes {stable_mosaic.version = 11 : i64} {
  func.func @_mlp_kernel(%arg0: i32, %arg1: memref<8x16xf32, #tpu.memory_space<vmem>>, %arg2: memref<16x32xf32, #tpu.memory_space<vmem>>, %arg3: memref<1x32xf32, #tpu.memory_space<vmem>>, %arg4: memref<32x4xf32, #tpu.memory_space<vmem>>, %arg5: memref<1x4xf32, #tpu.memory_space<vmem>>, %arg6: memref<8x4xf32, #tpu.memory_space<vmem>>) attributes {dimension_semantics = [#tpu.dimension_semantics<parallel>], iteration_bounds = array<i64: 1>, scalar_prefetch = 0 : i64, scratch_operands = 0 : i64, tpu.core_type = #tpu.core_type<tc>, window_params = [{transform_indices = @transform_0, window_bounds = array<i64: 8, 16>}, {pipeline_mode = #tpu.pipeline_mode<synchronous>, transform_indices = @transform_1, window_bounds = array<i64: 16, 32>}, {pipeline_mode = #tpu.pipeline_mode<synchronous>, transform_indices = @transform_2, window_bounds = array<i64: 1, 32>}, {pipeline_mode = #tpu.pipeline_mode<synchronous>, transform_indices = @transform_3, window_bounds = array<i64: 32, 4>}, {pipeline_mode = #tpu.pipeline_mode<synchronous>, transform_indices = @transform_4, window_bounds = array<i64: 1, 4>}, {transform_indices = @transform_5, window_bounds = array<i64: 8, 4>}]} {
    %c0 = arith.constant 0 : index
    %c0_0 = arith.constant 0 : index
    %0 = vector.load %arg1[%c0, %c0_0] : memref<8x16xf32, #tpu.memory_space<vmem>>, vector<8x16xf32>
    %c0_1 = arith.constant 0 : index
    %c0_2 = arith.constant 0 : index
    %1 = vector.load %arg2[%c0_1, %c0_2] : memref<16x32xf32, #tpu.memory_space<vmem>>, vector<16x32xf32>
    %cst = arith.constant dense<0.000000e+00> : vector<8x32xf32>
    %2 = tpu.matmul %0, %1, %cst {dimension_numbers = #tpu.dot_dimension_numbers<[1], [0], [0], [1], [0, 0, 1, 1], [], []>} : vector<8x16xf32>, vector<16x32xf32>, vector<8x32xf32> -> vector<8x32xf32>
    %c0_3 = arith.constant 0 : index
    %c0_4 = arith.constant 0 : index
    %3 = vector.load %arg3[%c0_3, %c0_4] : memref<1x32xf32, #tpu.memory_space<vmem>>, vector<1x32xf32>
    %4 = vector.broadcast %3 : vector<1x32xf32> to vector<8x32xf32>
    %5 = arith.addf %2, %4 : vector<8x32xf32>
    %cst_5 = arith.constant 0.000000e+00 : f32
    %6 = vector.broadcast %cst_5 : f32 to vector<8x32xf32>
    %7 = arith.maximumf %5, %6 : vector<8x32xf32>
    %c0_6 = arith.constant 0 : index
    %c0_7 = arith.constant 0 : index
    %8 = vector.load %arg4[%c0_6, %c0_7] : memref<32x4xf32, #tpu.memory_space<vmem>>, vector<32x4xf32>
    %cst_8 = arith.constant dense<0.000000e+00> : vector<8x4xf32>
    %9 = tpu.matmul %7, %8, %cst_8 {dimension_numbers = #tpu.dot_dimension_numbers<[1], [0], [0], [1], [0, 0, 1, 1], [], []>} : vector<8x32xf32>, vector<32x4xf32>, vector<8x4xf32> -> vector<8x4xf32>
    %c0_9 = arith.constant 0 : index
    %c0_10 = arith.constant 0 : index
    %10 = vector.load %arg5[%c0_9, %c0_10] : memref<1x4xf32, #tpu.memory_space<vmem>>, vector<1x4xf32>
    %11 = vector.broadcast %10 : vector<1x4xf32> to vector<8x4xf32>
    %12 = arith.addf %9, %11 : vector<8x4xf32>
    %c0_11 = arith.constant 0 : index
    %c0_12 = arith.constant 0 : index
    %13 = vector.load %arg6[%c0_11, %c0_12] : memref<8x4xf32, #tpu.memory_space<vmem>>, vector<8x4xf32>
    tpu.vector_store %arg6[%c0_11, %c0_12], %12 {strides = array<i32>} : memref<8x4xf32, #tpu.memory_space<vmem>>, vector<8x4xf32>,
    return
  }
  func.func @transform_0(%arg0: i32) -> (i32, i32) {
    %c0_i32 = arith.constant 0 : i32
    %c0_i32_0 = arith.constant 0 : i32
    return %arg0, %c0_i32 : i32, i32
  }
  func.func @transform_1(%arg0: i32) -> (i32, i32) {
    %c0_i32 = arith.constant 0 : i32
    %c0_i32_0 = arith.constant 0 : i32
    %c0_i32_1 = arith.constant 0 : i32
    return %c0_i32, %c0_i32_0 : i32, i32
  }
  func.func @transform_2(%arg0: i32) -> (i32, i32) {
    %c0_i32 = arith.constant 0 : i32
    %c0_i32_0 = arith.constant 0 : i32
    %c0_i32_1 = arith.constant 0 : i32
    return %c0_i32, %c0_i32_0 : i32, i32
  }
  func.func @transform_3(%arg0: i32) -> (i32, i32) {
    %c0_i32 = arith.constant 0 : i32
    %c0_i32_0 = arith.constant 0 : i32
    %c0_i32_1 = arith.constant 0 : i32
    return %c0_i32, %c0_i32_0 : i32, i32
  }
  func.func @transform_4(%arg0: i32) -> (i32, i32) {
    %c0_i32 = arith.constant 0 : i32
    %c0_i32_0 = arith.constant 0 : i32
    %c0_i32_1 = arith.constant 0 : i32
    return %c0_i32, %c0_i32_0 : i32, i32
  }
  func.func @transform_5(%arg0: i32) -> (i32, i32) {
    %c0_i32 = arith.constant 0 : i32
    %c0_i32_0 = arith.constant 0 : i32
    return %arg0, %c0_i32 : i32, i32
  }
}

</mosaic_0001>

<llo_original>
// kernel: line_q_net_forward.1
$region0: #{line_q_net_forward.1}
  #allocation0 [shape = 'u32[]', space=smem, size = 0x4, offset = 0x4, fixed_abs, tag = 'smem constant byte address 0x4 - core index']
  #allocation1 [shape = 'u32[144,128]{1,0:T(1,128)}', space=vmem, size = 0x12000, scoped, tag = 'internal scratch']
  %s0 = inlined_call_operand.vmem [shape: f32[8,16], index: 0, kind: input, shape index: {}]
  %s1 = inlined_call_operand.vmem [shape: f32[16,32], index: 1, kind: input, shape index: {}]
  %s2 = inlined_call_operand.vmem [shape: f32[1,32], index: 2, kind: input, shape index: {}]
  %s3 = inlined_call_operand.vmem [shape: f32[32,4], index: 3, kind: input, shape index: {}]
  %s4 = inlined_call_operand.vmem [shape: f32[1,4], index: 4, kind: input, shape index: {}]
  %s5 = inlined_call_operand.vmem [shape: f32[8,4], index: 5, kind: output, shape index: {}]
  %s6 = sld [smem:[#allocation0]]
  $region30: #{line_q_net_forward.1} parent=0
    _
  %s8 = ssub.s32 1, %s6
  %s9 = scalar_select 0, %s8, %s6
  // Predicated region
  $region2: #{line_q_net_forward.1} parent=0 // pred_check
    _
  $region3: #{line_q_net_forward.1} parent=0 // pred_check_branch
    %11 = sbr.rel (0) target = $region5
  $region4: #{line_q_net_forward.1} parent=0 // pred_region
    _
  $region5: #{line_q_net_forward.1} parent=0 // pred_fallthru
    _
  // Predicated region
  $region6: #{line_q_net_forward.1} parent=0 // pred_check
    _
  $region7: #{line_q_net_forward.1} parent=0 // pred_check_branch
    %13 = sbr.rel (0) target = $region9
  $region8: #{line_q_net_forward.1} parent=0 // pred_region
    _
  $region9: #{line_q_net_forward.1} parent=0 // pred_fallthru
    _
  // Predicated region
  $region10: #{line_q_net_forward.1} parent=0 // pred_check
    _
  $region11: #{line_q_net_forward.1} parent=0 // pred_check_branch
    %15 = sbr.rel (0) target = $region13
  $region12: #{line_q_net_forward.1} parent=0 // pred_region
    _
  $region13: #{line_q_net_forward.1} parent=0 // pred_fallthru
    _
  // Predicated region
  $region14: #{line_q_net_forward.1} parent=0 // pred_check
    _
  $region15: #{line_q_net_forward.1} parent=0 // pred_check_branch
    %17 = sbr.rel (0) target = $region17
  $region16: #{line_q_net_forward.1} parent=0 // pred_region
    _
  $region17: #{line_q_net_forward.1} parent=0 // pred_fallthru
    _
  // Predicated region
  $region18: #{line_q_net_forward.1} parent=0 // pred_check
    _
  $region19: #{line_q_net_forward.1} parent=0 // pred_check_branch
    %19 = sbr.rel (0) target = $region21
  $region20: #{line_q_net_forward.1} parent=0 // pred_region
    _
  $region21: #{line_q_net_forward.1} parent=0 // pred_fallthru
    _
  %v20 = vld [vmem:[%s0] sm:$0xff]
  %v21 = vld [vmem:[%s1] sm:$0xff]
  %v22 = vld [vmem:[%s1 + $0x8] sm:$0xff]
  %v23 = vld [vmem:[%s2] sm:$0x1]
  %v25 = vlaneseq
  %v26 = vshrl.u32 %v25, 7
  %v27 = vsub.s32 0, %v26
  %v28 = vrot.slane %v23, %v27
  %vm30 = vcmask 130048
  %v32 = vsel %vm30, %v20, 0
  %34 = vmatprep.subr.mxu0 0.0
  %35 = vmatpush1.msra.mxu0 0.0
  %36 = vmatprep.subr.mxu0 0.0
  %37 = vmatpush1.msra.mxu0 0.0
  %38 = vmatprep.subr.mxu0 0.0
  %39 = vmatpush1.msra.mxu0 0.0
  %40 = vmatprep.subr.mxu0 0.0
  %41 = vmatpush1.msra.mxu0 0.0
  %42 = vmatprep.subr.mxu0 0.0
  %43 = vmatpush1.msra.mxu0 0.0
  %44 = vmatprep.subr.mxu0 0.0
  %45 = vmatpush1.msra.mxu0 0.0
  %46 = vmatprep.subr.mxu0 0.0
  %47 = vmatpush1.msra.mxu0 0.0
  %48 = vmatprep.subr.mxu0 0.0
  %49 = vmatpush1.msra.mxu0 0.0
  %50 = vmatprep.subr.mxu0 0.0
  %51 = vmatpush1.msra.mxu0 0.0
  %52 = vmatprep.subr.mxu0 0.0
  %53 = vmatpush1.msra.mxu0 0.0
  %54 = vmatprep.subr.mxu0 0.0
  %55 = vmatpush1.msra.mxu0 0.0
  %56 = vmatprep.subr.mxu0 0.0
  %57 = vmatpush1.msra.mxu0 0.0
  %58 = vmatprep.subr.mxu0 0.0
  %59 = vmatpush1.msra.mxu0 0.0
  %60 = vmatprep.subr.mxu0 0.0
  %61 = vmatpush1.msra.mxu0 0.0
  %62 = vmatprep.subr.mxu0 0.0
  %63 = vmatpush1.msra.mxu0 %v22
  %64 = vmatprep.subr.mxu0 0.0
  %65 = vmatpush1.msra.mxu0 %v21
  %66 = vmatprep.subr.mxu0 0.0
  %67 = vmatpush2.msra.mxu0 0.0
  %68 = vmatprep.subr.mxu0 0.0
  %69 = vmatpush2.msra.mxu0 0.0
  %70 = vmatprep.subr.mxu0 0.0
  %71 = vmatpush2.msra.mxu0 0.0
  %72 = vmatprep.subr.mxu0 0.0
  %73 = vmatpush2.msra.mxu0 0.0
  %74 = vmatprep.subr.mxu0 0.0
  %75 = vmatpush2.msra.mxu0 0.0
  %76 = vmatprep.subr.mxu0 0.0
  %77 = vmatpush2.msra.mxu0 0.0
  %78 = vmatprep.subr.mxu0 0.0
  %79 = vmatpush2.msra.mxu0 0.0
  %80 = vmatprep.subr.mxu0 0.0
  %81 = vmatpush2.msra.mxu0 0.0
  %82 = vmatprep.subr.mxu0 0.0
  %83 = vmatpush2.msra.mxu0 0.0
  %84 = vmatprep.subr.mxu0 0.0
  %85 = vmatpush2.msra.mxu0 0.0
  %86 = vmatprep.subr.mxu0 0.0
  %87 = vmatpush2.msra.mxu0 0.0
  %88 = vmatprep.subr.mxu0 0.0
  %89 = vmatpush2.msra.mxu0 0.0
  %90 = vmatprep.subr.mxu0 0.0
  %91 = vmatpush2.msra.mxu0 0.0
  %92 = vmatprep.subr.mxu0 0.0
  %93 = vmatpush2.msra.mxu0 0.0
  %94 = vmatprep.subr.mxu0 0.0
  %95 = vmatpush2.msra.mxu0 0.0
  %96 = vmatprep.subr.mxu0 0.0
  %97 = vmatpush2.msra.mxu0 0.0
  %98 = vmatprep.mubr.f32.mxu0 0.0
  %99 = vmatmul.mubr.f32.gmra.mxu0 %v32
  %v100 = vpop.f32.mrf.mxu0
  %v101 = vadd.f32 %v28, %v100
  %v102 = vpop.f32.mrf.mxu0
  %103 = vdwg.mxu0
  %v104 = vmax.f32 %v101, 0.0
  %v105 = vld [vmem:[%s3] sm:$0xff]
  %v106 = vld [vmem:[%s3 + $0x8] sm:$0xff]
  %v107 = vld [vmem:[%s3 + $0x10] sm:$0xff]
  %v108 = vld [vmem:[%s3 + $0x18] sm:$0xff]
  %v109 = vld [vmem:[%s4] sm:$0x1]
  %v111 = vlaneseq
  %v112 = vshrl.u32 %v111, 7
  %v113 = vsub.s32 0, %v112
  %v114 = vrot.slane %v109, %v113
  %vm116 = vcmask 261120
  %v118 = vsel %vm116, %v104, 0
  %120 = vmatprep.subr.mxu0 0.0
  %121 = vmatpush1.msra.mxu0 0.0
  %122 = vmatprep.subr.mxu0 0.0
  %123 = vmatpush1.msra.mxu0 0.0
  %124 = vmatprep.subr.mxu0 0.0
  %125 = vmatpush1.msra.mxu0 0.0
  %126 = vmatprep.subr.mxu0 0.0
  %127 = vmatpush1.msra.mxu0 0.0
  %128 = vmatprep.subr.mxu0 0.0
  %129 = vmatpush1.msra.mxu0 0.0
  %130 = vmatprep.subr.mxu0 0.0
  %131 = vmatpush1.msra.mxu0 0.0
  %132 = vmatprep.subr.mxu0 0.0
  %133 = vmatpush1.msra.mxu0 0.0
  %134 = vmatprep.subr.mxu0 0.0
  %135 = vmatpush1.msra.mxu0 0.0
  %136 = vmatprep.subr.mxu0 0.0
  %137 = vmatpush1.msra.mxu0 0.0
  %138 = vmatprep.subr.mxu0 0.0
  %139 = vmatpush1.msra.mxu0 0.0
  %140 = vmatprep.subr.mxu0 0.0
  %141 = vmatpush1.msra.mxu0 0.0
  %142 = vmatprep.subr.mxu0 0.0
  %143 = vmatpush1.msra.mxu0 0.0
  %144 = vmatprep.subr.mxu0 0.0
  %145 = vmatpush1.msra.mxu0 %v108
  %146 = vmatprep.subr.mxu0 0.0
  %147 = vmatpush1.msra.mxu0 %v107
  %148 = vmatprep.subr.mxu0 0.0
  %149 = vmatpush1.msra.mxu0 %v106
  %150 = vmatprep.subr.mxu0 0.0
  %151 = vmatpush1.msra.mxu0 %v105
  %152 = vmatprep.subr.mxu0 0.0
  %153 = vmatpush2.msra.mxu0 0.0
  %154 = vmatprep.subr.mxu0 0.0
  %155 = vmatpush2.msra.mxu0 0.0
  %156 = vmatprep.subr.mxu0 0.0
  %157 = vmatpush2.msra.mxu0 0.0
  %158 = vmatprep.subr.mxu0 0.0
  %159 = vmatpush2.msra.mxu0 0.0
  %160 = vmatprep.subr.mxu0 0.0
  %161 = vmatpush2.msra.mxu0 0.0
  %162 = vmatprep.subr.mxu0 0.0
  %163 = vmatpush2.msra.mxu0 0.0
  %164 = vmatprep.subr.mxu0 0.0
  %165 = vmatpush2.msra.mxu0 0.0
  %166 = vmatprep.subr.mxu0 0.0
  %167 = vmatpush2.msra.mxu0 0.0
  %168 = vmatprep.subr.mxu0 0.0
  %169 = vmatpush2.msra.mxu0 0.0
  %170 = vmatprep.subr.mxu0 0.0
  %171 = vmatpush2.msra.mxu0 0.0
  %172 = vmatprep.subr.mxu0 0.0
  %173 = vmatpush2.msra.mxu0 0.0
  %174 = vmatprep.subr.mxu0 0.0
  %175 = vmatpush2.msra.mxu0 0.0
  %176 = vmatprep.subr.mxu0 0.0
  %177 = vmatpush2.msra.mxu0 0.0
  %178 = vmatprep.subr.mxu0 0.0
  %179 = vmatpush2.msra.mxu0 0.0
  %180 = vmatprep.subr.mxu0 0.0
  %181 = vmatpush2.msra.mxu0 0.0
  %182 = vmatprep.subr.mxu0 0.0
  %183 = vmatpush2.msra.mxu0 0.0
  %184 = vmatprep.mubr.f32.mxu0 0.0
  %185 = vmatmul.mubr.f32.gmra.mxu0 %v118
  %v186 = vpop.f32.mrf.mxu0
  %v187 = vadd.f32 %v114, %v186
  %v188 = vpop.f32.mrf.mxu0
  %189 = vdwg.mxu0
  %vm190 = vcmask 31744
  %191 = vst.msk [vmem:[%s5] sm:$0xff] %vm190, %v187
  // Predicated region
  $region22: #{line_q_net_forward.1} parent=0 // pred_check
    _
  $region23: #{line_q_net_forward.1} parent=0 // pred_check_branch
    %193 = sbr.rel (0) target = $region25
  $region24: #{line_q_net_forward.1} parent=0 // pred_region
    _
  $region25: #{line_q_net_forward.1} parent=0 // pred_fallthru
    _
  // Predicated region
  $region26: #{line_q_net_forward.1} parent=0 // pred_check
    _
  $region27: #{line_q_net_forward.1} parent=0 // pred_check_branch
    %195 = sbr.rel (0) target = $region29
  $region28: #{line_q_net_forward.1} parent=0 // pred_region
    _
  $region29: #{line_q_net_forward.1} parent=0 // pred_fallthru
    _

</llo_original>
